<compile_context>
chip_gen: v7x
topology: tpu7x:2x2x1
jax: 0.10.0
libtpu: 0.0.40
codegen_flags: <defaults>
</compile_context>

<pallas_src>
import jax
import jax.numpy as jnp
import numpy as np
from jax.experimental import pallas as pl
from jax.experimental.pallas import tpu as pltpu


# ----------------------------- Pallas kernel --------------------------------

def _make_fused_kernel(num_layers, hid_size):
    """Fused (2-layer GRU step + ReLU + Linear head) kernel over a time grid.

    Positional refs:
      x_ref        (1, B, obs)     per-step input features
      h0_ref       (L, B, H)       initial hidden stack (read only at t == 0)
      per layer l:
        w_ref      (in_l+H, 4H)    bf16 fused weight [[Wir,Wiz,Win,0],[Whr,Whz,0,Whn]]
        b_ref      (1, 4H)         f32  [b_ir+b_hr, b_iz+b_hz, b_in, b_hn]
      wout_ref     (H, A_pad)      bf16 head weight^T (lane-padded)
      bout_ref     (1, A_pad)      f32  head bias (lane-padded)
      out_ref      (1, B, A_pad)   per-step policy logits
      h_ref        (L, B, H)       hidden stack; VMEM-resident carry + output
    """
    H = hid_size

    def kernel(*refs):
        x_ref, h0_ref = refs[0], refs[1]
        wout_ref, bout_ref = refs[2 + 2 * num_layers], refs[3 + 2 * num_layers]
        out_ref, h_ref = refs[-2], refs[-1]

        t = pl.program_id(0)

        # h_ref (the hidden-state OUTPUT) has a constant index_map, so it stays
        # VMEM-resident across all grid steps and doubles as the recurrent carry.
        @pl.when(t == 0)
        def _():
            h_ref[...] = h0_ref[...]

        layer_in = x_ref[0]                                    # (B, in0) f32
        for layer in range(num_layers):
            w_ref = refs[2 + 2 * layer]                        # (in_l+H, 4H) bf16
            b_ref = refs[3 + 2 * layer]                        # (1, 4H) f32
            h = h_ref[layer]                                   # (B, H) f32

            # Single MXU dot per layer:
            #   [x, h] @ [[Wir,Wiz,Win,0],[Whr,Whz,0,Whn]]
            # -> (B, 4H) = [xr+hr, xz+hz, xn, hn], accumulated in f32.
            xh = jnp.concatenate([layer_in, h], axis=1).astype(jnp.bfloat16)
            pre = jnp.dot(xh, w_ref[...], preferred_element_type=jnp.float32)
            b = b_ref[...]

            # One EUP sigmoid over the contiguous (B, 2H) r/z slab.
            rz = jax.nn.sigmoid(pre[:, :2 * H] + b[:, :2 * H])
            r = rz[:, :H]
            z = rz[:, H:]
            n = jnp.tanh(pre[:, 2 * H:3 * H] + b[:, 2 * H:3 * H]
                         + r * (pre[:, 3 * H:] + b[:, 3 * H:]))
            h_new = n + z * (h - n)                            # == (1-z)*n + z*h

            h_ref[layer] = h_new
            layer_in = h_new

        # Fused ReLU + Linear head; lane-dense (128-padded) output store.
        relu_h = jnp.maximum(layer_in, 0.0).astype(jnp.bfloat16)
        out_ref[0] = (jnp.dot(relu_h, wout_ref[...],
                              preferred_element_type=jnp.float32)
                      + bout_ref[...])

    return kernel


def gru_policy_forward(x_seq, hidden, packed_w, packed_b, out_w_pad, out_b_pad):
    """Run T recurrent GRU-policy steps in ONE pallas_call.

    x_seq  : (T, B, obs) f32
    hidden : (L, B, H)   f32 (updated in place via input_output_aliases)
    returns: logits (T, B, A_pad) f32, new hidden (L, B, H) f32
    """
    T, B, obs = x_seq.shape
    L, _, H = hidden.shape
    A_pad = out_w_pad.shape[-1]

    flat = [x_seq, hidden]
    in_specs = [
        pl.BlockSpec((1, B, obs), lambda t: (t, 0, 0)),        # per-step input
        pl.BlockSpec((L, B, H), lambda t: (0, 0, 0)),          # initial hidden (resident)
    ]
    for w, b in zip(packed_w, packed_b):
        flat += [w, b]
        in_specs.append(pl.BlockSpec(w.shape, lambda t: (0, 0)))   # weights resident
        in_specs.append(pl.BlockSpec(b.shape, lambda t: (0, 0)))   # biases resident
    flat += [out_w_pad, out_b_pad]
    in_specs.append(pl.BlockSpec(out_w_pad.shape, lambda t: (0, 0)))
    in_specs.append(pl.BlockSpec(out_b_pad.shape, lambda t: (0, 0)))

    return pl.pallas_call(
        _make_fused_kernel(L, H),
        grid=(T,),
        out_shape=(jax.ShapeDtypeStruct((T, B, A_pad), jnp.float32),
                   jax.ShapeDtypeStruct((L, B, H), jnp.float32)),
        in_specs=in_specs,
        out_specs=(pl.BlockSpec((1, B, A_pad), lambda t: (t, 0, 0)),
                   pl.BlockSpec((L, B, H), lambda t: (0, 0, 0))),
        # Hidden stack updated in place: input 1 (hidden) aliases output 1.
        input_output_aliases={1: 1},
        compiler_params=pltpu.CompilerParams(
            dimension_semantics=("arbitrary",)),               # time is sequential
    )(*flat)


# ----------------------------- Module wrapper --------------------------------

class GRULayer:
    """JAX/Pallas port of the PyTorch GRULayer forward pass."""

    def __init__(self, obs_size, act_size, hid_size=128, num_layers=2, key=None):
        self.obs_size = obs_size
        self.act_size = act_size
        self.hid_size = hid_size
        self.num_layers = num_layers
        self.act_pad = ((act_size + 127) // 128) * 128         # lane-dense head

        if key is None:
            key = jax.random.PRNGKey(0)
        H = hid_size
        k = 1.0 / float(hid_size) ** 0.5

        self.raw_params = []      # f32 torch-layout params (reference / master copy)
        self.packed_w = []        # (in_l+H, 4H) bf16 fused weights
        self.packed_b = []        # (1, 4H) f32 fused biases
        for layer in range(num_layers):
            in_size = obs_size if layer == 0 else hid_size
            key, k1, k2, k3, k4 = jax.random.split(key, 5)
            w_ih = jax.random.uniform(k1, (3 * H, in_size), jnp.float32, -k, k)
            w_hh = jax.random.uniform(k2, (3 * H, H), jnp.float32, -k, k)
            b_ih = jax.random.uniform(k3, (3 * H,), jnp.float32, -k, k)
            b_hh = jax.random.uniform(k4, (3 * H,), jnp.float32, -k, k)
            self.raw_params.append((w_ih, w_hh, b_ih, b_hh))

            wir, wiz, win = w_ih[:H].T, w_ih[H:2 * H].T, w_ih[2 * H:].T   # (in, H)
            whr, whz, whn = w_hh[:H].T, w_hh[H:2 * H].T, w_hh[2 * H:].T   # (H, H)
            top = jnp.concatenate(
                [wir, wiz, win, jnp.zeros((in_size, H), jnp.float32)], axis=1)
            bot = jnp.concatenate(
                [whr, whz, jnp.zeros((H, H), jnp.float32), whn], axis=1)
            w_packed = jnp.concatenate([top, bot], axis=0).astype(jnp.bfloat16)
            b_packed = jnp.concatenate([
                b_ih[:H] + b_hh[:H],          # combined r bias
                b_ih[H:2 * H] + b_hh[H:2 * H],  # combined z bias
                b_ih[2 * H:],                 # input n bias
                b_hh[2 * H:],                 # hidden n bias (inside r*(...))
            ]).reshape(1, 4 * H).astype(jnp.float32)
            self.packed_w.append(w_packed)
            self.packed_b.append(b_packed)

        key, k5, k6 = jax.random.split(key, 3)
        ko = 1.0 / float(hid_size) ** 0.5
        out_w_t = jax.random.uniform(k5, (H, act_size), jnp.float32, -ko, ko)
        out_b = jax.random.uniform(k6, (act_size,), jnp.float32, -ko, ko)
        self.out_w_f32 = out_w_t
        self.out_b_f32 = out_b
        # Lane-dense (128-padded) head weights for the kernel.
        self.out_w_pad = (jnp.zeros((H, self.act_pad), jnp.float32)
                          .at[:, :act_size].set(out_w_t).astype(jnp.bfloat16))
        self.out_b_pad = (jnp.zeros((1, self.act_pad), jnp.float32)
                          .at[0, :act_size].set(out_b))

    def __call__(self, obs, hidden_state=None):
        """Single step (seq_len == 1), matching the PyTorch forward."""
        B = obs.shape[0]
        x = obs.reshape(B, -1).astype(jnp.float32)[None]        # (1, B, obs)
        if hidden_state is None:
            hidden_state = jnp.zeros(
                (self.num_layers, B, self.hid_size), jnp.float32)
        out, new_hidden = gru_policy_forward(
            x, hidden_state, self.packed_w, self.packed_b,
            self.out_w_pad, self.out_b_pad)
        return out[0, :, :self.act_size], new_hidden

    def rollout(self, obs_seq, hidden_state=None):
        """T recurrent steps in one kernel launch: (T, B, obs) -> (T, B, act)."""
        T, B = obs_seq.shape[0], obs_seq.shape[1]
        x = obs_seq.reshape(T, B, -1).astype(jnp.float32)
        if hidden_state is None:
            hidden_state = jnp.zeros(
                (self.num_layers, B, self.hid_size), jnp.float32)
        out, new_hidden = gru_policy_forward(
            x, hidden_state, self.packed_w, self.packed_b,
            self.out_w_pad, self.out_b_pad)
        return out[..., :self.act_size], new_hidden


# --------------------------- pure-JAX reference -------------------------------

def _reference_forward(model, obs, hidden_state=None):
    """f32 reference following the torch GRU equations exactly."""
    B = obs.shape[0]
    H = model.hid_size
    x = obs.reshape(B, -1).astype(jnp.float32)
    if hidden_state is None:
        hidden_state = jnp.zeros((model.num_layers, B, H), jnp.float32)
    new_hidden = []
    layer_in = x
    for layer in range(model.num_layers):
        w_ih, w_hh, b_ih, b_hh = model.raw_params[layer]
        h = hidden_state[layer]
        gi = layer_in @ w_ih.T + b_ih
        gh = h @ w_hh.T + b_hh
        r = jax.nn.sigmoid(gi[:, :H] + gh[:, :H])
        z = jax.nn.sigmoid(gi[:, H:2 * H] + gh[:, H:2 * H])
        n = jnp.tanh(gi[:, 2 * H:] + r * gh[:, 2 * H:])
        h_new = (1.0 - z) * n + z * h
        new_hidden.append(h_new)
        layer_in = h_new
    out = jnp.maximum(layer_in, 0.0) @ model.out_w_f32 + model.out_b_f32
    return out, jnp.stack(new_hidden, axis=0)


# ---------------------------------- main --------------------------------------

if __name__ == "__main__":
    batch = 2
    obs_size = 16
    act_size = 4
    hid_size = 32
    num_layers = 2
    T = 8

    model = GRULayer(obs_size, act_size, hid_size=hid_size,
                     num_layers=num_layers, key=jax.random.PRNGKey(0))

    key = jax.random.PRNGKey(0)
    key, k_obs, k_seq = jax.random.split(key, 3)
    obs = jax.random.normal(k_obs, (batch, obs_size), jnp.float32)
    obs_seq = jax.random.normal(k_seq, (T, batch, obs_size), jnp.float32)

    # bf16 MXU weights => relaxed tolerances vs the f32 reference.
    TOL = dict(rtol=1e-2, atol=1e-2)

    # Step 1: hidden_state=None path (zeros init).
    out, hidden = model(obs)
    out = jax.block_until_ready(out)
    hidden = jax.block_until_ready(hidden)
    assert out.shape == (batch, act_size)
    assert hidden.shape == (num_layers, batch, hid_size)

    ref_out, ref_hid = _reference_forward(model, obs)
    np.testing.assert_allclose(np.asarray(out), np.asarray(ref_out), **TOL)
    np.testing.assert_allclose(np.asarray(hidden), np.asarray(ref_hid), **TOL)

    # Step 2: recurrent use, carrying the hidden state.
    out2, hidden2 = model(obs, hidden)
    out2 = jax.block_until_ready(out2)
    hidden2 = jax.block_until_ready(hidden2)

    ref_out2, ref_hid2 = _reference_forward(model, obs, ref_hid)
    np.testing.assert_allclose(np.asarray(out2), np.asarray(ref_out2), **TOL)
    np.testing.assert_allclose(np.asarray(hidden2), np.asarray(ref_hid2), **TOL)

    # Rollout: T steps in ONE pallas_call (weights stay VMEM-resident).
    outs, hid_T = model.rollout(obs_seq)
    outs = jax.block_until_ready(outs)
    hid_T = jax.block_until_ready(hid_T)
    assert outs.shape == (T, batch, act_size)
    assert hid_T.shape == (num_layers, batch, hid_size)

    ref_h = None
    ref_outs = []
    for t in range(T):
        ro, ref_h = _reference_forward(model, obs_seq[t], ref_h)
        ref_outs.append(ro)
    ref_outs = jnp.stack(ref_outs, axis=0)
    np.testing.assert_allclose(np.asarray(outs), np.asarray(ref_outs),
                               rtol=2e-2, atol=2e-2)
    np.testing.assert_allclose(np.asarray(hid_T), np.asarray(ref_h),
                               rtol=2e-2, atol=2e-2)

    print("KERNEL_OK")
</pallas_src>

<mosaic_0001>
module attributes {stable_mosaic.version = 11 : i64} {
  func.func @kernel(%arg0: i32, %arg1: memref<1x2x16xf32, #tpu.memory_space<vmem>>, %arg2: memref<2x2x32xf32, #tpu.memory_space<vmem>>, %arg3: memref<48x128xbf16, #tpu.memory_space<vmem>>, %arg4: memref<1x128xf32, #tpu.memory_space<vmem>>, %arg5: memref<64x128xbf16, #tpu.memory_space<vmem>>, %arg6: memref<1x128xf32, #tpu.memory_space<vmem>>, %arg7: memref<32x128xbf16, #tpu.memory_space<vmem>>, %arg8: memref<1x128xf32, #tpu.memory_space<vmem>>, %arg9: memref<1x2x128xf32, #tpu.memory_space<vmem>>, %arg10: memref<2x2x32xf32, #tpu.memory_space<vmem>>) attributes {dimension_semantics = [#tpu.dimension_semantics<arbitrary>], iteration_bounds = array<i64: 1>, scalar_prefetch = 0 : i64, scratch_operands = 0 : i64, tpu.core_type = #tpu.core_type<tc>, window_params = [{transform_indices = @transform_0, window_bounds = array<i64: 1, 2, 16>}, {pipeline_mode = #tpu.pipeline_mode<synchronous>, transform_indices = @transform_1, window_bounds = array<i64: 2, 2, 32>}, {pipeline_mode = #tpu.pipeline_mode<synchronous>, transform_indices = @transform_2, window_bounds = array<i64: 48, 128>}, {pipeline_mode = #tpu.pipeline_mode<synchronous>, transform_indices = @transform_3, window_bounds = array<i64: 1, 128>}, {pipeline_mode = #tpu.pipeline_mode<synchronous>, transform_indices = @transform_4, window_bounds = array<i64: 64, 128>}, {pipeline_mode = #tpu.pipeline_mode<synchronous>, transform_indices = @transform_5, window_bounds = array<i64: 1, 128>}, {pipeline_mode = #tpu.pipeline_mode<synchronous>, transform_indices = @transform_6, window_bounds = array<i64: 32, 128>}, {pipeline_mode = #tpu.pipeline_mode<synchronous>, transform_indices = @transform_7, window_bounds = array<i64: 1, 128>}, {transform_indices = @transform_8, window_bounds = array<i64: 1, 2, 128>}, {pipeline_mode = #tpu.pipeline_mode<synchronous>, transform_indices = @transform_9, window_bounds = array<i64: 2, 2, 32>}]} {
    %c0_i32 = arith.constant 0 : i32
    %0 = arith.cmpi eq, %arg0, %c0_i32 : i32
    %1 = arith.extui %0 : i1 to i32
    %c0_i32_0 = arith.constant 0 : i32
    %2 = arith.cmpi ne, %1, %c0_i32_0 : i32
    scf.if %2 {
      %c0_34 = arith.constant 0 : index
      %c0_35 = arith.constant 0 : index
      %c0_36 = arith.constant 0 : index
      %86 = vector.load %arg2[%c0_34, %c0_35, %c0_36] : memref<2x2x32xf32, #tpu.memory_space<vmem>>, vector<2x2x32xf32>
      %c0_37 = arith.constant 0 : index
      %c0_38 = arith.constant 0 : index
      %c0_39 = arith.constant 0 : index
      %87 = vector.load %arg10[%c0_37, %c0_38, %c0_39] : memref<2x2x32xf32, #tpu.memory_space<vmem>>, vector<2x2x32xf32>
      tpu.vector_store %arg10[%c0_37, %c0_38, %c0_39], %86 {strides = array<i32>} : memref<2x2x32xf32, #tpu.memory_space<vmem>>, vector<2x2x32xf32>,
    } else {
    }
    %c0 = arith.constant 0 : index
    %c0_1 = arith.constant 0 : index
    %c0_2 = arith.constant 0 : index
    %3 = vector.load %arg1[%c0, %c0_1, %c0_2] : memref<1x2x16xf32, #tpu.memory_space<vmem>>, vector<1x2x16xf32>
    %4 = vector.shape_cast %3 : vector<1x2x16xf32> to vector<2x16xf32>
    %c0_3 = arith.constant 0 : index
    %c0_4 = arith.constant 0 : index
    %c0_5 = arith.constant 0 : index
    %5 = vector.load %arg10[%c0_3, %c0_4, %c0_5] : memref<2x2x32xf32, #tpu.memory_space<vmem>>, vector<1x2x32xf32>
    %6 = vector.shape_cast %5 : vector<1x2x32xf32> to vector<2x32xf32>
    %7 = tpu.concatenate %4, %6 in 1 : vector<2x16xf32>, vector<2x32xf32> -> vector<2x48xf32>
    %8 = arith.truncf %7 : vector<2x48xf32> to vector<2x48xbf16>
    %c0_6 = arith.constant 0 : index
    %c0_7 = arith.constant 0 : index
    %9 = vector.load %arg3[%c0_6, %c0_7] : memref<48x128xbf16, #tpu.memory_space<vmem>>, vector<48x128xbf16>
    %cst = arith.constant dense<0.000000e+00> : vector<2x128xf32>
    %10 = tpu.matmul %8, %9, %cst {dimension_numbers = #tpu.dot_dimension_numbers<[1], [0], [0], [1], [0, 0, 1, 1], [], []>} : vector<2x48xbf16>, vector<48x128xbf16>, vector<2x128xf32> -> vector<2x128xf32>
    %c0_8 = arith.constant 0 : index
    %c0_9 = arith.constant 0 : index
    %11 = vector.load %arg4[%c0_8, %c0_9] : memref<1x128xf32, #tpu.memory_space<vmem>>, vector<1x128xf32>
    %12 = vector.extract_strided_slice %10 {offsets = [0, 0], sizes = [2, 64], strides = [1, 1]} : vector<2x128xf32> to vector<2x64xf32>
    %13 = vector.extract_strided_slice %11 {offsets = [0, 0], sizes = [1, 64], strides = [1, 1]} : vector<1x128xf32> to vector<1x64xf32>
    %14 = vector.broadcast %13 : vector<1x64xf32> to vector<2x64xf32>
    %15 = arith.addf %12, %14 : vector<2x64xf32>
    %16 = arith.negf %15 : vector<2x64xf32>
    %17 = math.exp %16 : vector<2x64xf32>
    %cst_10 = arith.constant 1.000000e+00 : f32
    %18 = vector.broadcast %cst_10 : f32 to vector<2x64xf32>
    %19 = arith.addf %18, %17 : vector<2x64xf32>
    %20 = arith.divf %18, %19 : vector<2x64xf32>
    %21 = vector.extract_strided_slice %20 {offsets = [0, 0], sizes = [2, 32], strides = [1, 1]} : vector<2x64xf32> to vector<2x32xf32>
    %22 = vector.extract_strided_slice %20 {offsets = [0, 32], sizes = [2, 32], strides = [1, 1]} : vector<2x64xf32> to vector<2x32xf32>
    %23 = vector.extract_strided_slice %10 {offsets = [0, 64], sizes = [2, 32], strides = [1, 1]} : vector<2x128xf32> to vector<2x32xf32>
    %24 = vector.extract_strided_slice %11 {offsets = [0, 64], sizes = [1, 32], strides = [1, 1]} : vector<1x128xf32> to vector<1x32xf32>
    %25 = vector.broadcast %24 : vector<1x32xf32> to vector<2x32xf32>
    %26 = arith.addf %23, %25 : vector<2x32xf32>
    %27 = vector.extract_strided_slice %10 {offsets = [0, 96], sizes = [2, 32], strides = [1, 1]} : vector<2x128xf32> to vector<2x32xf32>
    %28 = vector.extract_strided_slice %11 {offsets = [0, 96], sizes = [1, 32], strides = [1, 1]} : vector<1x128xf32> to vector<1x32xf32>
    %29 = vector.broadcast %28 : vector<1x32xf32> to vector<2x32xf32>
    %30 = arith.addf %27, %29 : vector<2x32xf32>
    %31 = arith.mulf %21, %30 : vector<2x32xf32>
    %32 = arith.addf %26, %31 : vector<2x32xf32>
    %33 = math.tanh %32 : vector<2x32xf32>
    %34 = arith.subf %6, %33 : vector<2x32xf32>
    %35 = arith.mulf %22, %34 : vector<2x32xf32>
    %36 = arith.addf %33, %35 : vector<2x32xf32>
    %c0_11 = arith.constant 0 : index
    %c0_12 = arith.constant 0 : index
    %c0_13 = arith.constant 0 : index
    %37 = vector.load %arg10[%c0_11, %c0_12, %c0_13] : memref<2x2x32xf32, #tpu.memory_space<vmem>>, vector<1x2x32xf32>
    %38 = vector.shape_cast %37 : vector<1x2x32xf32> to vector<2x32xf32>
    %39 = vector.shape_cast %36 : vector<2x32xf32> to vector<1x2x32xf32>
    tpu.vector_store %arg10[%c0_11, %c0_12, %c0_13], %39 {strides = array<i32>} : memref<2x2x32xf32, #tpu.memory_space<vmem>>, vector<1x2x32xf32>,
    %c1 = arith.constant 1 : index
    %c0_14 = arith.constant 0 : index
    %c0_15 = arith.constant 0 : index
    %40 = vector.load %arg10[%c1, %c0_14, %c0_15] : memref<2x2x32xf32, #tpu.memory_space<vmem>>, vector<1x2x32xf32>
    %41 = vector.shape_cast %40 : vector<1x2x32xf32> to vector<2x32xf32>
    %42 = tpu.concatenate %36, %41 in 1 : vector<2x32xf32>, vector<2x32xf32> -> vector<2x64xf32>
    %43 = arith.truncf %42 : vector<2x64xf32> to vector<2x64xbf16>
    %c0_16 = arith.constant 0 : index
    %c0_17 = arith.constant 0 : index
    %44 = vector.load %arg5[%c0_16, %c0_17] : memref<64x128xbf16, #tpu.memory_space<vmem>>, vector<64x128xbf16>
    %cst_18 = arith.constant dense<0.000000e+00> : vector<2x128xf32>
    %45 = tpu.matmul %43, %44, %cst_18 {dimension_numbers = #tpu.dot_dimension_numbers<[1], [0], [0], [1], [0, 0, 1, 1], [], []>} : vector<2x64xbf16>, vector<64x128xbf16>, vector<2x128xf32> -> vector<2x128xf32>
    %c0_19 = arith.constant 0 : index
    %c0_20 = arith.constant 0 : index
    %46 = vector.load %arg6[%c0_19, %c0_20] : memref<1x128xf32, #tpu.memory_space<vmem>>, vector<1x128xf32>
    %47 = vector.extract_strided_slice %45 {offsets = [0, 0], sizes = [2, 64], strides = [1, 1]} : vector<2x128xf32> to vector<2x64xf32>
    %48 = vector.extract_strided_slice %46 {offsets = [0, 0], sizes = [1, 64], strides = [1, 1]} : vector<1x128xf32> to vector<1x64xf32>
    %49 = vector.broadcast %48 : vector<1x64xf32> to vector<2x64xf32>
    %50 = arith.addf %47, %49 : vector<2x64xf32>
    %51 = arith.negf %50 : vector<2x64xf32>
    %52 = math.exp %51 : vector<2x64xf32>
    %cst_21 = arith.constant 1.000000e+00 : f32
    %53 = vector.broadcast %cst_21 : f32 to vector<2x64xf32>
    %54 = arith.addf %53, %52 : vector<2x64xf32>
    %55 = arith.divf %53, %54 : vector<2x64xf32>
    %56 = vector.extract_strided_slice %55 {offsets = [0, 0], sizes = [2, 32], strides = [1, 1]} : vector<2x64xf32> to vector<2x32xf32>
    %57 = vector.extract_strided_slice %55 {offsets = [0, 32], sizes = [2, 32], strides = [1, 1]} : vector<2x64xf32> to vector<2x32xf32>
    %58 = vector.extract_strided_slice %45 {offsets = [0, 64], sizes = [2, 32], strides = [1, 1]} : vector<2x128xf32> to vector<2x32xf32>
    %59 = vector.extract_strided_slice %46 {offsets = [0, 64], sizes = [1, 32], strides = [1, 1]} : vector<1x128xf32> to vector<1x32xf32>
    %60 = vector.broadcast %59 : vector<1x32xf32> to vector<2x32xf32>
    %61 = arith.addf %58, %60 : vector<2x32xf32>
    %62 = vector.extract_strided_slice %45 {offsets = [0, 96], sizes = [2, 32], strides = [1, 1]} : vector<2x128xf32> to vector<2x32xf32>
    %63 = vector.extract_strided_slice %46 {offsets = [0, 96], sizes = [1, 32], strides = [1, 1]} : vector<1x128xf32> to vector<1x32xf32>
    %64 = vector.broadcast %63 : vector<1x32xf32> to vector<2x32xf32>
    %65 = arith.addf %62, %64 : vector<2x32xf32>
    %66 = arith.mulf %56, %65 : vector<2x32xf32>
    %67 = arith.addf %61, %66 : vector<2x32xf32>
    %68 = math.tanh %67 : vector<2x32xf32>
    %69 = arith.subf %41, %68 : vector<2x32xf32>
    %70 = arith.mulf %57, %69 : vector<2x32xf32>
    %71 = arith.addf %68, %70 : vector<2x32xf32>
    %c1_22 = arith.constant 1 : index
    %c0_23 = arith.constant 0 : index
    %c0_24 = arith.constant 0 : index
    %72 = vector.load %arg10[%c1_22, %c0_23, %c0_24] : memref<2x2x32xf32, #tpu.memory_space<vmem>>, vector<1x2x32xf32>
    %73 = vector.shape_cast %72 : vector<1x2x32xf32> to vector<2x32xf32>
    %74 = vector.shape_cast %71 : vector<2x32xf32> to vector<1x2x32xf32>
    tpu.vector_store %arg10[%c1_22, %c0_23, %c0_24], %74 {strides = array<i32>} : memref<2x2x32xf32, #tpu.memory_space<vmem>>, vector<1x2x32xf32>,
    %cst_25 = arith.constant 0.000000e+00 : f32
    %75 = vector.broadcast %cst_25 : f32 to vector<2x32xf32>
    %76 = arith.maximumf %71, %75 : vector<2x32xf32>
    %77 = arith.truncf %76 : vector<2x32xf32> to vector<2x32xbf16>
    %c0_26 = arith.constant 0 : index
    %c0_27 = arith.constant 0 : index
    %78 = vector.load %arg7[%c0_26, %c0_27] : memref<32x128xbf16, #tpu.memory_space<vmem>>, vector<32x128xbf16>
    %cst_28 = arith.constant dense<0.000000e+00> : vector<2x128xf32>
    %79 = tpu.matmul %77, %78, %cst_28 {dimension_numbers = #tpu.dot_dimension_numbers<[1], [0], [0], [1], [0, 0, 1, 1], [], []>} : vector<2x32xbf16>, vector<32x128xbf16>, vector<2x128xf32> -> vector<2x128xf32>
    %c0_29 = arith.constant 0 : index
    %c0_30 = arith.constant 0 : index
    %80 = vector.load %arg8[%c0_29, %c0_30] : memref<1x128xf32, #tpu.memory_space<vmem>>, vector<1x128xf32>
    %81 = vector.broadcast %80 : vector<1x128xf32> to vector<2x128xf32>
    %82 = arith.addf %79, %81 : vector<2x128xf32>
    %c0_31 = arith.constant 0 : index
    %c0_32 = arith.constant 0 : index
    %c0_33 = arith.constant 0 : index
    %83 = vector.load %arg9[%c0_31, %c0_32, %c0_33] : memref<1x2x128xf32, #tpu.memory_space<vmem>>, vector<1x2x128xf32>
    %84 = vector.shape_cast %83 : vector<1x2x128xf32> to vector<2x128xf32>
    %85 = vector.shape_cast %82 : vector<2x128xf32> to vector<1x2x128xf32>
    tpu.vector_store %arg9[%c0_31, %c0_32, %c0_33], %85 {strides = array<i32>} : memref<1x2x128xf32, #tpu.memory_space<vmem>>, vector<1x2x128xf32>,
    return
  }
  func.func @transform_0(%arg0: i32) -> (i32, i32, i32) {
    %c0_i32 = arith.constant 0 : i32
    %c0_i32_0 = arith.constant 0 : i32
    %c0_i32_1 = arith.constant 0 : i32
    return %arg0, %c0_i32, %c0_i32_0 : i32, i32, i32
  }
  func.func @transform_1(%arg0: i32) -> (i32, i32, i32) {
    %c0_i32 = arith.constant 0 : i32
    %c0_i32_0 = arith.constant 0 : i32
    %c0_i32_1 = arith.constant 0 : i32
    %c0_i32_2 = arith.constant 0 : i32
    return %c0_i32, %c0_i32_0, %c0_i32_1 : i32, i32, i32
  }
  func.func @transform_2(%arg0: i32) -> (i32, i32) {
    %c0_i32 = arith.constant 0 : i32
    %c0_i32_0 = arith.constant 0 : i32
    %c0_i32_1 = arith.constant 0 : i32
    return %c0_i32, %c0_i32_0 : i32, i32
  }
  func.func @transform_3(%arg0: i32) -> (i32, i32) {
    %c0_i32 = arith.constant 0 : i32
    %c0_i32_0 = arith.constant 0 : i32
    %c0_i32_1 = arith.constant 0 : i32
    return %c0_i32, %c0_i32_0 : i32, i32
  }
  func.func @transform_4(%arg0: i32) -> (i32, i32) {
    %c0_i32 = arith.constant 0 : i32
    %c0_i32_0 = arith.constant 0 : i32
    %c0_i32_1 = arith.constant 0 : i32
    return %c0_i32, %c0_i32_0 : i32, i32
  }
  func.func @transform_5(%arg0: i32) -> (i32, i32) {
    %c0_i32 = arith.constant 0 : i32
    %c0_i32_0 = arith.constant 0 : i32
    %c0_i32_1 = arith.constant 0 : i32
    return %c0_i32, %c0_i32_0 : i32, i32
  }
  func.func @transform_6(%arg0: i32) -> (i32, i32) {
    %c0_i32 = arith.constant 0 : i32
    %c0_i32_0 = arith.constant 0 : i32
    %c0_i32_1 = arith.constant 0 : i32
    return %c0_i32, %c0_i32_0 : i32, i32
  }
  func.func @transform_7(%arg0: i32) -> (i32, i32) {
    %c0_i32 = arith.constant 0 : i32
    %c0_i32_0 = arith.constant 0 : i32
    %c0_i32_1 = arith.constant 0 : i32
    return %c0_i32, %c0_i32_0 : i32, i32
  }
  func.func @transform_8(%arg0: i32) -> (i32, i32, i32) {
    %c0_i32 = arith.constant 0 : i32
    %c0_i32_0 = arith.constant 0 : i32
    %c0_i32_1 = arith.constant 0 : i32
    return %arg0, %c0_i32, %c0_i32_0 : i32, i32, i32
  }
  func.func @transform_9(%arg0: i32) -> (i32, i32, i32) {
    %c0_i32 = arith.constant 0 : i32
    %c0_i32_0 = arith.constant 0 : i32
    %c0_i32_1 = arith.constant 0 : i32
    %c0_i32_2 = arith.constant 0 : i32
    return %c0_i32, %c0_i32_0, %c0_i32_1 : i32, i32, i32
  }
}

</mosaic_0001>

<llo_original>
// kernel: tpu_custom_call.1
$region0: #{tpu_custom_call.1}
  #allocation0 [shape = 'u32[]', space=smem, size = 0x4, offset = 0x4, fixed_abs, tag = 'smem constant byte address 0x4 - core index']
  #allocation1 [shape = 'u32[144,128]{1,0:T(1,128)}', space=vmem, size = 0x12000, scoped, tag = 'internal scratch']
  %s0 = inlined_call_operand.vmem [shape: f32[1,2,16], index: 0, kind: input, shape index: {}]
  %s1 = inlined_call_operand.hbm [shape: f32[2,2,32], index: 1, kind: input, shape index: {}, may-alias: {1,9}]
  %s2 = inlined_call_operand.vmem [shape: bf16[48,128], index: 2, kind: input, shape index: {}]
  %s3 = inlined_call_operand.hbm [shape: f32[1,128], index: 3, kind: input, shape index: {}]
  %s4 = inlined_call_operand.hbm [shape: bf16[64,128], index: 4, kind: input, shape index: {}]
  %s5 = inlined_call_operand.hbm [shape: f32[1,128], index: 5, kind: input, shape index: {}]
  %s6 = inlined_call_operand.hbm [shape: bf16[32,128], index: 6, kind: input, shape index: {}]
  %s7 = inlined_call_operand.hbm [shape: f32[1,128], index: 7, kind: input, shape index: {}]
  %s8 = inlined_call_operand.hbm [shape: f32[1,2,128], index: 8, kind: output, shape index: {0}]
  %s9 = inlined_call_operand.hbm [shape: f32[2,2,32], index: 9, kind: output, shape index: {1}, may-alias: {1,9}]
  %10 = xla_tuple %s8, %s9
  %s11 = sld [smem:[#allocation0]]
  $region78: #{tpu_custom_call.1} parent=0
    _
  %s13 = ssub.s32 1, %s11
  %s14 = scalar_select 0, %s13, %s11
  $region1: #{tpu_custom_call.1} parent=0
    #allocation2 [shape = 'u8[2048]{0}', space=vmem, size = 0x800, scoped, tag = 'input window, operand 1, single buffered']
    #allocation3 [shape = 's32[1]{0}', space=sflag, size = 0x4, scoped, tag = 'scoped memory for tpu_custom_call.1']
    #allocation4 [shape = 's32[1]{0}', space=sflag, size = 0x4, scoped, tag = 'scoped memory for tpu_custom_call.1']
    #allocation5 [shape = 'u8[512]{0}', space=vmem, size = 0x400, scoped, tag = 'input window, operand 3, single buffered']
    #allocation6 [shape = 's32[1]{0}', space=sflag, size = 0x4, scoped, tag = 'scoped memory for tpu_custom_call.1']
    #allocation7 [shape = 'u8[16384]{0}', space=vmem, size = 0x4000, scoped, tag = 'input window, operand 4, single buffered']
    #allocation8 [shape = 'u8[512]{0}', space=vmem, size = 0x400, scoped, tag = 'input window, operand 5, single buffered']
    #allocation9 [shape = 's32[1]{0}', space=sflag, size = 0x4, scoped, tag = 'scoped memory for tpu_custom_call.1']
    #allocation10 [shape = 'u8[8192]{0}', space=vmem, size = 0x2000, scoped, tag = 'input window, operand 6, single buffered']
    #allocation11 [shape = 'u8[512]{0}', space=vmem, size = 0x400, scoped, tag = 'input window, operand 7, single buffered']
    #allocation12 [shape = 's32[1]{0}', space=sflag, size = 0x4, scoped, tag = 'scoped memory for tpu_custom_call.1']
    #allocation13 [shape = 'u8[1024]{0}', space=vmem, size = 0x400, scoped, tag = 'output window, operand 0, single buffered']
    #allocation14 [shape = 'u8[2048]{0}', space=vmem, size = 0x800, scoped, tag = 'output window, operand 1, single buffered']
    #allocation15 [shape = 's32[1]{0}', space=sflag, size = 0x4, scoped, tag = 'scoped memory for tpu_custom_call.1']
    %15 = vsyncpa [#allocation3], 0
    %16 = vsyncpa [#allocation6], 0
    %17 = vsyncpa [#allocation9], 0
    %18 = vsyncpa [#allocation12], 0
    %19 = vsyncpa [#allocation4], 0
    %20 = vsyncpa [#allocation15], 0
    // Predicated region
    $region2: #{tpu_custom_call.1} parent=1 // pred_check
      _
    $region3: #{tpu_custom_call.1} parent=1 // pred_check_branch
      %22 = sbr.rel (0) target = $region5
    $region4: #{tpu_custom_call.1} parent=1 // pred_region
      _
    $region5: #{tpu_custom_call.1} parent=1 // pred_fallthru
      _
    // Predicated region
    $region6: #{tpu_custom_call.1} parent=1 // pred_check
      _
    $region7: #{tpu_custom_call.1} parent=1 // pred_check_branch
      %24 = sbr.rel (0) target = $region9
    $region8: #{tpu_custom_call.1} parent=1 // pred_region
      %s26 = ssub.s32 64, 64
      %27 = vsyncadd [#allocation3], %s26
      %s28 = sshll.u32 [#allocation2], 4
      %s29 = int_to_ptr.vmem [resolvable:$true] %s28
      %34 = dma.hbm_to_vmem [thread:$0]  %s1, 64, %s29, [#allocation3], 32, 32, 2
    $region9: #{tpu_custom_call.1} parent=1 // pred_fallthru
      _
    // Predicated region
    $region10: #{tpu_custom_call.1} parent=1 // pred_check
      _
    $region11: #{tpu_custom_call.1} parent=1 // pred_check_branch
      %36 = sbr.rel (0) target = $region13
    $region12: #{tpu_custom_call.1} parent=1 // pred_region
      _
    $region13: #{tpu_custom_call.1} parent=1 // pred_fallthru
      _
    // Predicated region
    $region14: #{tpu_custom_call.1} parent=1 // pred_check
      _
    $region15: #{tpu_custom_call.1} parent=1 // pred_check_branch
      %38 = sbr.rel (0) target = $region17
    $region16: #{tpu_custom_call.1} parent=1 // pred_region
      %s40 = ssub.s32 16, 16
      %41 = vsyncadd [#allocation6], %s40
      %s43 = sshll.u32 [#allocation5], 4
      %s44 = int_to_ptr.vmem [resolvable:$true] %s43
      %46 = dma.hbm_to_vmem [thread:$0]  %s3, 16, %s44, [#allocation6]
    $region17: #{tpu_custom_call.1} parent=1 // pred_fallthru
      _
    // Predicated region
    $region18: #{tpu_custom_call.1} parent=1 // pred_check
      _
    $region19: #{tpu_custom_call.1} parent=1 // pred_check_branch
      %48 = sbr.rel (0) target = $region21
    $region20: #{tpu_custom_call.1} parent=1 // pred_region
      %s50 = ssub.s32 512, 512
      %51 = vsyncadd [#allocation6], %s50
      %s52 = sshll.u32 [#allocation7], 4
      %s53 = int_to_ptr.vmem [resolvable:$true] %s52
      %58 = dma.hbm_to_vmem [thread:$0]  %s4, 512, %s53, [#allocation6], 64, 64, 4
    $region21: #{tpu_custom_call.1} parent=1 // pred_fallthru
      _
    // Predicated region
    $region22: #{tpu_custom_call.1} parent=1 // pred_check
      _
    $region23: #{tpu_custom_call.1} parent=1 // pred_check_branch
      %60 = sbr.rel (0) target = $region25
    $region24: #{tpu_custom_call.1} parent=1 // pred_region
      %s62 = ssub.s32 16, 16
      %63 = vsyncadd [#allocation9], %s62
      %s65 = sshll.u32 [#allocation8], 4
      %s66 = int_to_ptr.vmem [resolvable:$true] %s65
      %68 = dma.hbm_to_vmem [thread:$0]  %s5, 16, %s66, [#allocation9]
    $region25: #{tpu_custom_call.1} parent=1 // pred_fallthru
      _
    // Predicated region
    $region26: #{tpu_custom_call.1} parent=1 // pred_check
      _
    $region27: #{tpu_custom_call.1} parent=1 // pred_check_branch
      %70 = sbr.rel (0) target = $region29
    $region28: #{tpu_custom_call.1} parent=1 // pred_region
      %s72 = ssub.s32 256, 256
      %73 = vsyncadd [#allocation9], %s72
      %s74 = sshll.u32 [#allocation10], 4
      %s75 = int_to_ptr.vmem [resolvable:$true] %s74
      %80 = dma.hbm_to_vmem [thread:$0]  %s6, 256, %s75, [#allocation9], 64, 64, 4
    $region29: #{tpu_custom_call.1} parent=1 // pred_fallthru
      _
    // Predicated region
    $region30: #{tpu_custom_call.1} parent=1 // pred_check
      _
    $region31: #{tpu_custom_call.1} parent=1 // pred_check_branch
      %82 = sbr.rel (0) target = $region33
    $region32: #{tpu_custom_call.1} parent=1 // pred_region
      %s84 = ssub.s32 16, 16
      %85 = vsyncadd [#allocation12], %s84
      %s87 = sshll.u32 [#allocation11], 4
      %s88 = int_to_ptr.vmem [resolvable:$true] %s87
      %90 = dma.hbm_to_vmem [thread:$0]  %s7, 16, %s88, [#allocation12]
    $region33: #{tpu_custom_call.1} parent=1 // pred_fallthru
      _
    // Predicated region
    $region34: #{tpu_custom_call.1} parent=1 // pred_check
      _
    $region35: #{tpu_custom_call.1} parent=1 // pred_check_branch
      %92 = sbr.rel (0) target = $region37
    $region36: #{tpu_custom_call.1} parent=1 // pred_region
      %93 = dma.done [#allocation3], 64
    $region37: #{tpu_custom_call.1} parent=1 // pred_fallthru
      _
    // Predicated region
    $region38: #{tpu_custom_call.1} parent=1 // pred_check
      _
    $region39: #{tpu_custom_call.1} parent=1 // pred_check_branch
      %95 = sbr.rel (0) target = $region41
    $region40: #{tpu_custom_call.1} parent=1 // pred_region
      %96 = dma.done [#allocation6], 16
    $region41: #{tpu_custom_call.1} parent=1 // pred_fallthru
      _
    // Predicated region
    $region42: #{tpu_custom_call.1} parent=1 // pred_check
      _
    $region43: #{tpu_custom_call.1} parent=1 // pred_check_branch
      %98 = sbr.rel (0) target = $region45
    $region44: #{tpu_custom_call.1} parent=1 // pred_region
      %99 = dma.done [#allocation6], 512
    $region45: #{tpu_custom_call.1} parent=1 // pred_fallthru
      _
    // Predicated region
    $region46: #{tpu_custom_call.1} parent=1 // pred_check
      _
    $region47: #{tpu_custom_call.1} parent=1 // pred_check_branch
      %101 = sbr.rel (0) target = $region49
    $region48: #{tpu_custom_call.1} parent=1 // pred_region
      %102 = dma.done [#allocation9], 16
    $region49: #{tpu_custom_call.1} parent=1 // pred_fallthru
      _
    // Predicated region
    $region50: #{tpu_custom_call.1} parent=1 // pred_check
      _
    $region51: #{tpu_custom_call.1} parent=1 // pred_check_branch
      %104 = sbr.rel (0) target = $region53
    $region52: #{tpu_custom_call.1} parent=1 // pred_region
      %105 = dma.done [#allocation9], 256
    $region53: #{tpu_custom_call.1} parent=1 // pred_fallthru
      _
    // Predicated region
    $region54: #{tpu_custom_call.1} parent=1 // pred_check
      _
    $region55: #{tpu_custom_call.1} parent=1 // pred_check_branch
      %107 = sbr.rel (0) target = $region57
    $region56: #{tpu_custom_call.1} parent=1 // pred_region
      %108 = dma.done [#allocation12], 16
    $region57: #{tpu_custom_call.1} parent=1 // pred_fallthru
      _
    %p110 = scmp.eq.s32.totalorder 0, 0
    // Predicated region
    $region58: #{tpu_custom_call.1} parent=1 // pred_check
      %p111 = pneg %p110
    $region59: #{tpu_custom_call.1} parent=1 // pred_check_branch
      %113 = sbr.rel (%p111) target = $region61
    $region60: #{tpu_custom_call.1} parent=1 // pred_region
      %v114 = vld [vmem:[#allocation2] sm:$0x3]
      %v115 = vld [vmem:[#allocation2 + $0x2] sm:$0x3]
      %vm116 = vcmask 254976
      %117 = vst.msk [vmem:[#allocation14] sm:$0x3] %vm116, %v114
      %118 = vst.msk [vmem:[#allocation14 + $0x2] sm:$0x3] %vm116, %v115
    $region61: #{tpu_custom_call.1} parent=1 // pred_fallthru
      _
    %v119 = vld [vmem:[%s0] sm:$0x3]
    %v120 = vld [vmem:[#allocation14] sm:$0x3]
    %122 = vrot.lane.b32.xlu0 %v120, 16
    %v123 = vpop.permute.xlu0 %122
    %vm125 = vcmask 130048
    %v126 = vsel %vm125, %v119, %v123
    %v127 = vpack.c.bf16 %v126, %v126
    %v128 = vld [vmem:[%s2] sm:$0xf]
    %v129 = vld [vmem:[%s2 + $0x4] sm:$0xf]
    %v130 = vld [vmem:[%s2 + $0x8] sm:$0xf]
    %v131 = vld [vmem:[%s2 + $0xc] sm:$0xf]
    %v132 = vld [vmem:[%s2 + $0x10] sm:$0xf]
    %v133 = vld [vmem:[%s2 + $0x14] sm:$0xf]
    %v140 = vunpack.c.l.b16 %v128
    %v141 = vunpack.c.l.b16 %v129
    %v142 = vunpack.c.l.b16 %v130
    %v143 = vunpack.c.l.b16 %v131
    %v144 = vunpack.c.l.b16 %v132
    %v145 = vunpack.c.l.b16 %v133
    %v146 = vpack.c.b16 %v141, %v140
    %v147 = vpack.c.b16 %v143, %v142
    %v148 = vpack.c.b16 %v145, %v144
    %vm152 = vcmask 392192
    %v154 = vsel %vm152, %v127, 0
    %156 = vmatprep.subr.bf16.mxu0 0
    %157 = vmatpush1.bf16.msra.mxu0 %v146
    %158 = vmatprep.subr.bf16.mxu0 0
    %159 = vmatpush1.bf16.msra.mxu0 %v147
    %160 = vmatprep.subr.bf16.mxu0 0
    %161 = vmatpush1.bf16.msra.mxu0 %v148
    %162 = vmatprep.subr.bf16.mxu0 0
    %163 = vmatpush1.bf16.msra.mxu0 0
    %164 = vmatprep.subr.bf16.mxu0 0
    %165 = vmatpush1.bf16.msra.mxu0 0
    %166 = vmatprep.subr.bf16.mxu0 0
    %167 = vmatpush1.bf16.msra.mxu0 0
    %168 = vmatprep.subr.bf16.mxu0 0
    %169 = vmatpush1.bf16.msra.mxu0 0
    %170 = vmatprep.subr.bf16.mxu0 0
    %171 = vmatpush1.bf16.msra.mxu0 0
    %172 = vmatprep.subr.bf16.mxu0 0
    %173 = vmatpush1.bf16.msra.mxu0 0
    %174 = vmatprep.subr.bf16.mxu0 0
    %175 = vmatpush1.bf16.msra.mxu0 0
    %176 = vmatprep.subr.bf16.mxu0 0
    %177 = vmatpush1.bf16.msra.mxu0 0
    %178 = vmatprep.subr.bf16.mxu0 0
    %179 = vmatpush1.bf16.msra.mxu0 0
    %180 = vmatprep.subr.bf16.mxu0 0
    %181 = vmatpush1.bf16.msra.mxu0 0
    %182 = vmatprep.subr.bf16.mxu0 0
    %183 = vmatpush1.bf16.msra.mxu0 0
    %184 = vmatprep.subr.bf16.mxu0 0
    %185 = vmatpush1.bf16.msra.mxu0 0
    %186 = vmatprep.subr.bf16.mxu0 0
    %187 = vmatpush1.bf16.msra.mxu0 0
    %188 = vmatprep.mubr.bf16.mxu0 0
    %189 = vmatmul.mubr.bf16.gmra.mrb[0].mxu0 %v154
    %v190 = vpop.f32.mrb[0].mxu0
    %v191 = vadd.f32 0.0, %v190
    %v192 = vpop.f32.mrb[0].mxu0
    %v193 = vpop.f32.mrb[0].mxu0
    %v194 = vpop.f32.mrb[0].mxu0
    %195 = vdwg.mxu0
    %v196 = vld [vmem:[#allocation5] sm:$0x1]
    %v198 = vlaneseq
    %v199 = vshrl.u32 %v198, 7
    %v200 = vsub.s32 0, %v199
    %v201 = vrot.slane %v196, %v200
    %v203 = vadd.f32 %v191, %v201
    %v204 = vxor.u32 %v203, 2147483648
    %v205 = vmul.f32 %v204, 1.442695
    %v206 = vpow.pop %v205
    %v207 = vadd.f32 %v206, 1.0
    %v208 = vrcp.pop %v207
    %v209 = vmul.f32 1.0, %v208
    %211 = vrot.lane.b32.xlu0 %v203, 32
    %v212 = vpop.permute.xlu0 %211
    %v214 = vmul.f32 %v209, %v212
    %216 = vrot.lane.b32.xlu0 %v214, 64
    %v217 = vpop.permute.xlu0 %216
    %v219 = vadd.f32 %v203, %v217
    %v220 = vtanh.pop %v219
    %222 = vrot.lane.b32.xlu0 %v220, 64
    %v223 = vpop.permute.xlu0 %222
    %v225 = vsub.f32 %v120, %v223
    %227 = vrot.lane.b32.xlu0 %v225, 32
    %v228 = vpop.permute.xlu0 %227
    %v230 = vmul.f32 %v209, %v228
    %232 = vrot.lane.b32.xlu0 %v230, 32
    %v233 = vpop.permute.xlu0 %232
    %v235 = vadd.f32 %v220, %v233
    %237 = vrot.lane.b32.xlu0 %v235, 64
    %v238 = vpop.permute.xlu0 %237
    %vm240 = vcmask 254976
    %241 = vst.msk [vmem:[#allocation14] sm:$0x3] %vm240, %v238
    %s242 = scalar_lea.vmem [#allocation14], 2
    %v243 = vld [vmem:[%s242] sm:$0x3]
    %245 = vrot.lane.b32.xlu0 %v243, 32
    %v246 = vpop.permute.xlu0 %245
    %vm248 = vcmask 261120
    %v249 = vsel %vm248, %v238, %v246
    %v250 = vpack.c.bf16 %v249, %v249
    %v251 = vld [vmem:[#allocation7] sm:$0xf]
    %v252 = vld [vmem:[#allocation7 + $0x4] sm:$0xf]
    %v253 = vld [vmem:[#allocation7 + $0x8] sm:$0xf]
    %v254 = vld [vmem:[#allocation7 + $0xc] sm:$0xf]
    %v255 = vld [vmem:[#allocation7 + $0x10] sm:$0xf]
    %v256 = vld [vmem:[#allocation7 + $0x14] sm:$0xf]
    %v257 = vld [vmem:[#allocation7 + $0x18] sm:$0xf]
    %v258 = vld [vmem:[#allocation7 + $0x1c] sm:$0xf]
    %v267 = vunpack.c.l.b16 %v251
    %v268 = vunpack.c.l.b16 %v252
    %v269 = vunpack.c.l.b16 %v253
    %v270 = vunpack.c.l.b16 %v254
    %v271 = vunpack.c.l.b16 %v255
    %v272 = vunpack.c.l.b16 %v256
    %v273 = vunpack.c.l.b16 %v257
    %v274 = vunpack.c.l.b16 %v258
    %v275 = vpack.c.b16 %v268, %v267
    %v276 = vpack.c.b16 %v270, %v269
    %v277 = vpack.c.b16 %v272, %v271
    %v278 = vpack.c.b16 %v274, %v273
    %vm283 = vcmask 523264
    %v285 = vsel %vm283, %v250, 0
    %287 = vmatprep.subr.bf16.mxu0 0
    %288 = vmatpush1.bf16.msra.mxu0 %v275
    %289 = vmatprep.subr.bf16.mxu0 0
    %290 = vmatpush1.bf16.msra.mxu0 %v276
    %291 = vmatprep.subr.bf16.mxu0 0
    %292 = vmatpush1.bf16.msra.mxu0 %v277
    %293 = vmatprep.subr.bf16.mxu0 0
    %294 = vmatpush1.bf16.msra.mxu0 %v278
    %295 = vmatprep.subr.bf16.mxu0 0
    %296 = vmatpush1.bf16.msra.mxu0 0
    %297 = vmatprep.subr.bf16.mxu0 0
    %298 = vmatpush1.bf16.msra.mxu0 0
    %299 = vmatprep.subr.bf16.mxu0 0
    %300 = vmatpush1.bf16.msra.mxu0 0
    %301 = vmatprep.subr.bf16.mxu0 0
    %302 = vmatpush1.bf16.msra.mxu0 0
    %303 = vmatprep.subr.bf16.mxu0 0
    %304 = vmatpush1.bf16.msra.mxu0 0
    %305 = vmatprep.subr.bf16.mxu0 0
    %306 = vmatpush1.bf16.msra.mxu0 0
    %307 = vmatprep.subr.bf16.mxu0 0
    %308 = vmatpush1.bf16.msra.mxu0 0
    %309 = vmatprep.subr.bf16.mxu0 0
    %310 = vmatpush1.bf16.msra.mxu0 0
    %311 = vmatprep.subr.bf16.mxu0 0
    %312 = vmatpush1.bf16.msra.mxu0 0
    %313 = vmatprep.subr.bf16.mxu0 0
    %314 = vmatpush1.bf16.msra.mxu0 0
    %315 = vmatprep.subr.bf16.mxu0 0
    %316 = vmatpush1.bf16.msra.mxu0 0
    %317 = vmatprep.subr.bf16.mxu0 0
    %318 = vmatpush1.bf16.msra.mxu0 0
    %319 = vmatprep.mubr.bf16.mxu0 0
    %320 = vmatmul.mubr.bf16.gmra.mrb[0].mxu0 %v285
    %v321 = vpop.f32.mrb[0].mxu0
    %v322 = vadd.f32 0.0, %v321
    %v323 = vpop.f32.mrb[0].mxu0
    %v324 = vpop.f32.mrb[0].mxu0
    %v325 = vpop.f32.mrb[0].mxu0
    %326 = vdwg.mxu0
    %v327 = vld [vmem:[#allocation8] sm:$0x1]
    %v329 = vlaneseq
    %v330 = vshrl.u32 %v329, 7
    %v331 = vsub.s32 0, %v330
    %v332 = vrot.slane %v327, %v331
    %v334 = vadd.f32 %v322, %v332
    %v335 = vxor.u32 %v334, 2147483648
    %v336 = vmul.f32 %v335, 1.442695
    %v337 = vpow.pop %v336
    %v338 = vadd.f32 %v337, 1.0
    %v339 = vrcp.pop %v338
    %v340 = vmul.f32 1.0, %v339
    %342 = vrot.lane.b32.xlu0 %v334, 32
    %v343 = vpop.permute.xlu0 %342
    %v345 = vmul.f32 %v340, %v343
    %347 = vrot.lane.b32.xlu0 %v345, 64
    %v348 = vpop.permute.xlu0 %347
    %v350 = vadd.f32 %v334, %v348
    %v351 = vtanh.pop %v350
    %353 = vrot.lane.b32.xlu0 %v351, 64
    %v354 = vpop.permute.xlu0 %353
    %v356 = vsub.f32 %v243, %v354
    %358 = vrot.lane.b32.xlu0 %v356, 32
    %v359 = vpop.permute.xlu0 %358
    %v361 = vmul.f32 %v340, %v359
    %363 = vrot.lane.b32.xlu0 %v361, 32
    %v364 = vpop.permute.xlu0 %363
    %v366 = vadd.f32 %v351, %v364
    %368 = vrot.lane.b32.xlu0 %v366, 64
    %v369 = vpop.permute.xlu0 %368
    %371 = vst.msk [vmem:[%s242] sm:$0x3] %vm240, %v369
    %v372 = vmax.f32 %v366, 0.0
    %v373 = vpack.c.bf16 %v372, %v372
    %v374 = vld [vmem:[#allocation10] sm:$0xf]
    %v375 = vld [vmem:[#allocation10 + $0x4] sm:$0xf]
    %v376 = vld [vmem:[#allocation10 + $0x8] sm:$0xf]
    %v377 = vld [vmem:[#allocation10 + $0xc] sm:$0xf]
    %v378 = vld [vmem:[#allocation11] sm:$0x1]
    %v380 = vlaneseq
    %v381 = vshrl.u32 %v380, 7
    %v382 = vsub.s32 0, %v381
    %v383 = vrot.slane %v378, %v382
    %386 = vrot.lane.b32.xlu0 %v373, 64
    %v387 = vpop.permute.xlu0 %386
    %v392 = vunpack.c.l.b16 %v374
    %v393 = vunpack.c.l.b16 %v375
    %v394 = vunpack.c.l.b16 %v376
    %v395 = vunpack.c.l.b16 %v377
    %v396 = vpack.c.b16 %v393, %v392
    %v397 = vpack.c.b16 %v395, %v394
    %v401 = vsel %vm248, %v387, 0
    %403 = vmatprep.subr.bf16.mxu0 0
    %404 = vmatpush1.bf16.msra.mxu0 %v396
    %405 = vmatprep.subr.bf16.mxu0 0
    %406 = vmatpush1.bf16.msra.mxu0 %v397
    %407 = vmatprep.subr.bf16.mxu0 0
    %408 = vmatpush1.bf16.msra.mxu0 0
    %409 = vmatprep.subr.bf16.mxu0 0
    %410 = vmatpush1.bf16.msra.mxu0 0
    %411 = vmatprep.subr.bf16.mxu0 0
    %412 = vmatpush1.bf16.msra.mxu0 0
    %413 = vmatprep.subr.bf16.mxu0 0
    %414 = vmatpush1.bf16.msra.mxu0 0
    %415 = vmatprep.subr.bf16.mxu0 0
    %416 = vmatpush1.bf16.msra.mxu0 0
    %417 = vmatprep.subr.bf16.mxu0 0
    %418 = vmatpush1.bf16.msra.mxu0 0
    %419 = vmatprep.subr.bf16.mxu0 0
    %420 = vmatpush1.bf16.msra.mxu0 0
    %421 = vmatprep.subr.bf16.mxu0 0
    %422 = vmatpush1.bf16.msra.mxu0 0
    %423 = vmatprep.subr.bf16.mxu0 0
    %424 = vmatpush1.bf16.msra.mxu0 0
    %425 = vmatprep.subr.bf16.mxu0 0
    %426 = vmatpush1.bf16.msra.mxu0 0
    %427 = vmatprep.subr.bf16.mxu0 0
    %428 = vmatpush1.bf16.msra.mxu0 0
    %429 = vmatprep.subr.bf16.mxu0 0
    %430 = vmatpush1.bf16.msra.mxu0 0
    %431 = vmatprep.subr.bf16.mxu0 0
    %432 = vmatpush1.bf16.msra.mxu0 0
    %433 = vmatprep.subr.bf16.mxu0 0
    %434 = vmatpush1.bf16.msra.mxu0 0
    %435 = vmatprep.mubr.bf16.mxu0 0
    %436 = vmatmul.mubr.bf16.gmra.mrb[0].mxu0 %v401
    %v437 = vpop.f32.mrb[0].mxu0
    %v438 = vadd.f32 %v383, %v437
    %v439 = vpop.f32.mrb[0].mxu0
    %v440 = vpop.f32.mrb[0].mxu0
    %v441 = vpop.f32.mrb[0].mxu0
    %442 = vdwg.mxu0
    %443 = vst [vmem:[#allocation13] sm:$0x3] %v438
    // Predicated region
    $region62: #{tpu_custom_call.1} parent=1 // pred_check
      _
    $region63: #{tpu_custom_call.1} parent=1 // pred_check_branch
      %445 = sbr.rel (0) target = $region65
    $region64: #{tpu_custom_call.1} parent=1 // pred_region
      %s447 = ssub.s32 32, 32
      %448 = vsyncadd [#allocation4], %s447
      %s450 = sshll.u32 [#allocation13], 4
      %s451 = int_to_ptr.vmem [resolvable:$true] %s450
      %453 = dma.vmem_to_hbm [thread:$0]  %s451, 32, %s8, [#allocation4]
    $region65: #{tpu_custom_call.1} parent=1 // pred_fallthru
      _
    // Predicated region
    $region66: #{tpu_custom_call.1} parent=1 // pred_check
      _
    $region67: #{tpu_custom_call.1} parent=1 // pred_check_branch
      %455 = sbr.rel (0) target = $region69
    $region68: #{tpu_custom_call.1} parent=1 // pred_region
      %s457 = ssub.s32 64, 64
      %458 = vsyncadd [#allocation15], %s457
      %s459 = sshll.u32 [#allocation14], 4
      %s460 = int_to_ptr.vmem [resolvable:$true] %s459
      %465 = dma.vmem_to_hbm [thread:$0]  %s460, 64, %s9, [#allocation15], 32, 32, 2
    $region69: #{tpu_custom_call.1} parent=1 // pred_fallthru
      _
    // Predicated region
    $region70: #{tpu_custom_call.1} parent=1 // pred_check
      _
    $region71: #{tpu_custom_call.1} parent=1 // pred_check_branch
      %467 = sbr.rel (0) target = $region73
    $region72: #{tpu_custom_call.1} parent=1 // pred_region
      %468 = dma.done [#allocation4], 32
    $region73: #{tpu_custom_call.1} parent=1 // pred_fallthru
      _
    // Predicated region
    $region74: #{tpu_custom_call.1} parent=1 // pred_check
      _
    $region75: #{tpu_custom_call.1} parent=1 // pred_check_branch
      %470 = sbr.rel (0) target = $region77
    $region76: #{tpu_custom_call.1} parent=1 // pred_region
      %471 = dma.done [#allocation15], 64
    $region77: #{tpu_custom_call.1} parent=1 // pred_fallthru
      _
    %472 = vsyncpa [#allocation3], 1
    %473 = vsyncpa [#allocation6], 1
    %474 = vsyncpa [#allocation9], 1
    %475 = vsyncpa [#allocation12], 1
    %476 = vsyncpa [#allocation4], 1
    %477 = vsyncpa [#allocation15], 1

</llo_original>
